<compile_context>
chip_gen: v6e
topology: v6e:2x2x1
jax: 0.10.0
libtpu: 0.0.40
codegen_flags: <defaults>
</compile_context>

<pallas_src>
import functools
import numpy as np

import jax
import jax.numpy as jnp
from jax import lax
from jax.experimental import pallas as pl
from jax.experimental.pallas import tpu as pltpu

NEG_INF = -10000000000.0  # matches torch.where(attn_mask, 0.0, -1e10)


def _pick_tile(dim, candidates):
    """Largest candidate that divides dim, else the full dim (always a legal block)."""
    for c in candidates:
        if dim % c == 0:
            return c
    return dim


# ----------------------------------------------------------------------------
# Kernel 1: multi-group projection  y[g] = act(x[g or 0] @ w_t[g] + b[g])
# ----------------------------------------------------------------------------
def _mproj_kernel(x_ref, w_ref, b_ref, o_ref, acc_ref, *, negative_slope, mxu_dtype):
    kk = pl.program_id(3)

    @pl.when(kk == 0)
    def _():
        acc_ref[...] = jnp.zeros_like(acc_ref)

    # w is already stored in mxu_dtype; only the activations need a cast.
    acc_ref[...] += jnp.dot(x_ref[0].astype(mxu_dtype), w_ref[0],
                            preferred_element_type=jnp.float32)

    @pl.when(kk == pl.num_programs(3) - 1)
    def _():
        y = acc_ref[...] + b_ref[0]                       # bias added in f32
        if negative_slope is not None:                    # LeakyReLU(0.2)
            y = jnp.where(y >= 0, y, negative_slope * y)
        o_ref[0] = y.astype(o_ref.dtype)


def multi_linear(x, w_ts, bs, negative_slope=None, mxu_dtype=jnp.bfloat16,
                 share_x=False, out_dtype=None):
    """Grouped projection.

    x    : (G, M, Din), or (1, M, Din) with share_x=True (the same activations
           are reused for every weight group -- no stacked HBM copy).
    w_ts : (G, Din, Dout)  pre-transposed weights, stored in mxu_dtype.
    bs   : (G, 1, Dout)    f32 biases.
    Output: (G, M, Dout) in out_dtype (defaults to mxu_dtype -> bf16 HBM traffic).
    """
    G, Din, Dout = w_ts.shape
    M = x.shape[1]
    assert x.shape[0] == (1 if share_x else G)
    if out_dtype is None:
        out_dtype = mxu_dtype

    tm = _pick_tile(M, (512, 256, 128))
    tn = _pick_tile(Dout, (512, 256, 128))
    tk = _pick_tile(Din, (1024, 512, 256))
    grid = (G, M // tm, Dout // tn, Din // tk)

    x_map = (lambda g, i, j, kk: (0, i, kk)) if share_x else \
            (lambda g, i, j, kk: (g, i, kk))

    kernel = functools.partial(_mproj_kernel, negative_slope=negative_slope,
                               mxu_dtype=mxu_dtype)
    cost = pl.CostEstimate(
        flops=2 * G * M * Din * Dout,
        transcendentals=0,
        bytes_accessed=(G * M * Din * x.dtype.itemsize
                        + G * Din * Dout * w_ts.dtype.itemsize
                        + 4 * G * Dout
                        + G * M * Dout * np.dtype(out_dtype).itemsize))

    return pl.pallas_call(
        kernel,
        out_shape=jax.ShapeDtypeStruct((G, M, Dout), out_dtype),
        grid=grid,
        in_specs=[
            pl.BlockSpec((1, tm, tk), x_map),
            pl.BlockSpec((1, tk, tn), lambda g, i, j, kk: (g, kk, j)),
            pl.BlockSpec((1, 1, tn), lambda g, i, j, kk: (g, 0, j)),
        ],
        out_specs=pl.BlockSpec((1, tm, tn), lambda g, i, j, kk: (g, i, j)),
        scratch_shapes=[pltpu.VMEM((tm, tn), jnp.float32)],
        compiler_params=pltpu.CompilerParams(
            dimension_semantics=("parallel", "parallel", "parallel", "arbitrary")),
        cost_estimate=cost,
    )(x, w_ts, bs)


# ----------------------------------------------------------------------------
# Kernel 2: attention for one (batch, q-tile); all heads per grid step
# ----------------------------------------------------------------------------
def _attn_kernel(q_ref, k_ref, v_ref, qm_ref, km_ref, o_ref, *,
                 H, Hd, inv_scale, causal, mxu_dtype):
    Lq_blk = q_ref.shape[1]
    Lk = k_ref.shape[1]

    # ---- per-(batch, q-tile) additive mask, built once for all H heads ------
    kvalid = km_ref[0] != 0.0                              # (1, Lk)
    if causal is None:
        valid = kvalid                                     # broadcasts over rows
    else:
        q0 = pl.program_id(1) * Lq_blk                     # q-tile row origin
        row = lax.broadcasted_iota(jnp.int32, (Lq_blk, Lk), 0) + q0
        col = lax.broadcasted_iota(jnp.int32, (Lq_blk, Lk), 1)
        valid = jnp.logical_and(kvalid, col <= row + causal)   # tril(diag=causal)
    add_mask = jnp.where(valid, 0.0, NEG_INF)              # f32

    # Padded-query rows are zeroed once on the head outputs, not on the (tq, Lk)
    # weights; masked columns rely on exp(-1e10 - m) underflowing to exactly 0 in
    # f32.  kv_any guards the "whole k row is padded" corner case.
    # TODO(synk): a q row whose causal window is entirely padded still differs
    #             from the reference (small nonzero instead of exact zero).
    qvalid = (qm_ref[0] != 0.0).astype(jnp.float32)        # (Lq_blk, 1)
    kv_any = jnp.max(kvalid.astype(jnp.float32))
    out_gate = qvalid * kv_any                             # (Lq_blk, 1)

    approx = np.dtype(mxu_dtype) != np.dtype(jnp.float32)

    # 1/scale folded into q (Lq*D mults instead of H*Lq*Lk); lane-dense loads.
    qx = (q_ref[0] * inv_scale).astype(mxu_dtype)          # (Lq_blk, D)
    kx = k_ref[0].astype(mxu_dtype)                        # (Lk, D)  (no-op if bf16)
    vx = v_ref[0].astype(mxu_dtype)

    # TODO(synk): static head unroll; see header TODO about head-major layout.
    for h in range(H):
        lo = h * Hd
        # scores: contract on Hd of both operands (no explicit k.T / XLU transpose)
        s = lax.dot_general(qx[:, lo:lo + Hd], kx[:, lo:lo + Hd],
                            dimension_numbers=(((1,), (1,)), ((), ())),
                            preferred_element_type=jnp.float32)   # (Lq_blk, Lk)
        s = s + add_mask
        m = jnp.max(s, axis=-1, keepdims=True)
        e = jnp.exp(s - m)
        denom = jnp.sum(e, axis=-1, keepdims=True)
        if approx:
            w = e * pl.reciprocal(denom, approx=True)      # EUP slot (fast path)
        else:
            w = e / denom                                  # exact (reference path)
        out_h = jnp.dot(w.astype(mxu_dtype), vx[:, lo:lo + Hd],
                        preferred_element_type=jnp.float32)
        # head h lands at features [lo:lo+Hd] of the merged (Lq, D) output block
        o_ref[0, :, lo:lo + Hd] = (out_h * out_gate).astype(o_ref.dtype)


def attention(q, k, v, q_mask, k_mask, num_heads, scale, causal=None,
              mxu_dtype=jnp.bfloat16, out_dtype=None):
    B, Lq, D = q.shape
    Lk = k.shape[1]
    Hd = D // num_heads
    if out_dtype is None:
        out_dtype = q.dtype

    tq = _pick_tile(Lq, (512, 256, 128))                   # q-tile grid axis

    qm = q_mask.reshape(B, Lq, 1).astype(jnp.float32)      # per-row gate (column)
    km = k_mask.reshape(B, 1, Lk).astype(jnp.float32)      # lane-dense row

    kernel = functools.partial(_attn_kernel, H=num_heads, Hd=Hd,
                               inv_scale=float(1.0 / scale), causal=causal,
                               mxu_dtype=mxu_dtype)
    cost = pl.CostEstimate(
        flops=4 * B * Lq * Lk * D,
        transcendentals=B * num_heads * Lq * Lk,
        bytes_accessed=(q.dtype.itemsize * (B * Lq * D + 2 * B * Lk * D)
                        + np.dtype(out_dtype).itemsize * B * Lq * D
                        + 4 * (B * Lq + B * Lk)))

    return pl.pallas_call(
        kernel,
        out_shape=jax.ShapeDtypeStruct((B, Lq, D), out_dtype),
        grid=(B, Lq // tq),
        in_specs=[
            pl.BlockSpec((1, tq, D), lambda b, qi: (b, qi, 0)),
            pl.BlockSpec((1, Lk, D), lambda b, qi: (b, 0, 0)),   # resident over qi
            pl.BlockSpec((1, Lk, D), lambda b, qi: (b, 0, 0)),   # resident over qi
            pl.BlockSpec((1, tq, 1), lambda b, qi: (b, qi, 0)),
            pl.BlockSpec((1, 1, Lk), lambda b, qi: (b, 0, 0)),
        ],
        out_specs=pl.BlockSpec((1, tq, D), lambda b, qi: (b, qi, 0)),
        compiler_params=pltpu.CompilerParams(
            dimension_semantics=("parallel", "parallel"),
            vmem_limit_bytes=48 * 1024 * 1024),
        cost_estimate=cost,
    )(q, k, v, qm, km)


# ----------------------------------------------------------------------------
# Module wrapper
# ----------------------------------------------------------------------------
class MHAPallas:
    def __init__(self, embed_dim, num_heads, dropout, intercalate_act, key,
                 mxu_dtype=jnp.bfloat16):
        assert embed_dim % num_heads == 0
        self.d = embed_dim
        self.H = num_heads
        self.Hd = embed_dim // num_heads
        self.scale = float(np.sqrt(self.Hd))
        self.negative_slope = 0.2 if intercalate_act else None
        self.mxu_dtype = mxu_dtype
        # dropout: inference mode -> identity
        bound = float(np.sqrt(6.0 / (embed_dim + embed_dim)))  # xavier_uniform_
        kq, kk, kv = jax.random.split(key, 3)

        def init_w(k):
            return jax.random.uniform(k, (embed_dim, embed_dim), jnp.float32,
                                      minval=-bound, maxval=bound)

        self.wq = init_w(kq)          # f32 masters (used by the reference check)
        self.wk = init_w(kk)
        self.wv = init_w(kv)
        # Pre-transposed, stacked, stored in the MXU dtype: halves the weight DMA
        # stream (bf16) and removes the per-tile f32->bf16 cast in the kernel.
        self.w_qkv_t = jnp.stack([self.wq.T, self.wk.T, self.wv.T],
                                 axis=0).astype(mxu_dtype)           # (3, D, D)
        self.b_qkv = jnp.zeros((3, 1, embed_dim), jnp.float32)       # added in f32

    def __call__(self, query, key, value, q_mask, k_mask, causal=None):
        # TODO(synk): return_w (attention weights) not exposed.
        B, Lq, D = query.shape
        Lk = key.shape[1]
        ns, dt = self.negative_slope, self.mxu_dtype

        if (query is key) and (query is value):
            # true self-attention: one fused call; x is read directly (no stacking)
            qkv = multi_linear(query.reshape(1, B * Lq, D), self.w_qkv_t,
                               self.b_qkv, ns, dt, share_x=True)
            q = qkv[0].reshape(B, Lq, D)
            k = qkv[1].reshape(B, Lq, D)
            v = qkv[2].reshape(B, Lq, D)
        else:
            q = multi_linear(query.reshape(1, B * Lq, D), self.w_qkv_t[0:1],
                             self.b_qkv[0:1], ns, dt)[0].reshape(B, Lq, D)
            if key is value:
                # shared K/V source: fused K,V projection over the same x
                kvp = multi_linear(key.reshape(1, B * Lk, D), self.w_qkv_t[1:3],
                                   self.b_qkv[1:3], ns, dt, share_x=True)
                k = kvp[0].reshape(B, Lk, D)
                v = kvp[1].reshape(B, Lk, D)
            else:
                # distinct sources: independent projections, no activation stacking
                k = multi_linear(key.reshape(1, B * Lk, D), self.w_qkv_t[1:2],
                                 self.b_qkv[1:2], ns, dt)[0].reshape(B, Lk, D)
                v = multi_linear(value.reshape(1, B * Lk, D), self.w_qkv_t[2:3],
                                 self.b_qkv[2:3], ns, dt)[0].reshape(B, Lk, D)

        # attention kernel writes the merged-head (B, Lq, D) layout directly;
        # final output keeps the module's input dtype.
        return attention(q, k, v, q_mask, k_mask, self.H, self.scale, causal,
                         dt, out_dtype=query.dtype)


# ----------------------------------------------------------------------------
# Pure-JAX reference (mirrors the PyTorch forward exactly) for verification
# ----------------------------------------------------------------------------
def mha_reference(m, query, key, value, q_mask, k_mask, causal=None):
    def proj(x, w, b):
        y = x @ w.T + b.reshape(-1)
        if m.negative_slope is not None:
            y = jnp.where(y >= 0, y, m.negative_slope * y)
        return y

    B, Lq, D = query.shape
    Lk = key.shape[1]
    H, Hd = m.H, m.Hd
    q = proj(query, m.wq, m.b_qkv[0]).reshape(B, Lq, H, Hd).transpose(0, 2, 1, 3)
    k = proj(key, m.wk, m.b_qkv[1]).reshape(B, Lk, H, Hd).transpose(0, 2, 1, 3)
    v = proj(value, m.wv, m.b_qkv[2]).reshape(B, Lk, H, Hd).transpose(0, 2, 1, 3)
    mask = (q_mask[:, None, :, None] * k_mask[:, None, None, :]) != 0.0
    if causal is not None:
        row = jnp.arange(Lq)[:, None]
        col = jnp.arange(Lk)[None, :]
        mask = jnp.logical_and(mask, col <= row + causal)
    add_mask = jnp.where(mask, 0.0, NEG_INF)
    s = (add_mask + jnp.einsum("bhqd,bhkd->bhqk", q, k)) / m.scale
    w = jax.nn.softmax(s, axis=-1) * mask.astype(s.dtype)
    out = jnp.einsum("bhqk,bhkd->bhqd", w, v)
    return out.transpose(0, 2, 1, 3).reshape(B, Lq, D)


if __name__ == "__main__":
    B, Lq, Lk = 2, 8, 8
    embed_dim, num_heads = 32, 4

    root = jax.random.PRNGKey(0)
    kp, kq, kk_, kv = jax.random.split(root, 4)

    query = jax.random.normal(kq, (B, Lq, embed_dim), jnp.float32)
    key_ = jax.random.normal(kk_, (B, Lk, embed_dim), jnp.float32)
    value = jax.random.normal(kv, (B, Lk, embed_dim), jnp.float32)
    # padding masks (1 = valid, 0 = padded)
    q_mask = jnp.ones((B, Lq), jnp.float32).at[1, 6:].set(0.0)
    k_mask = jnp.ones((B, Lk), jnp.float32).at[1, 5:].set(0.0)

    # 1) Fast path: bf16 q/k/v + weights in HBM, bf16 MXU operands, f32 softmax.
    #    Distinct q/k/v sources, no causal mask.  Loose tolerance sanity bound.
    mha_fast = MHAPallas(embed_dim, num_heads, dropout=0.1, intercalate_act=True,
                         key=kp, mxu_dtype=jnp.bfloat16)
    out_fast = jax.block_until_ready(
        mha_fast(query, key_, value, q_mask, k_mask, causal=None))
    ref_fast = mha_reference(mha_fast, query, key_, value, q_mask, k_mask, causal=None)
    np.testing.assert_allclose(np.asarray(out_fast), np.asarray(ref_fast),
                               rtol=1e-1, atol=1e-1)

    # 2) Reference-faithful f32 path: true self-attention (shared x) + causal mask,
    #    exact softmax division, tight tolerance.
    mha_f32 = MHAPallas(embed_dim, num_heads, dropout=0.1, intercalate_act=True,
                        key=kp, mxu_dtype=jnp.float32)
    out_f32 = jax.block_until_ready(
        mha_f32(query, query, query, q_mask, q_mask, causal=1))
    ref_f32 = mha_reference(mha_f32, query, query, query, q_mask, q_mask, causal=1)
    np.testing.assert_allclose(np.asarray(out_f32), np.asarray(ref_f32),
                               rtol=2e-3, atol=2e-3)

    # 3) f32 cross-attention with a shared K/V source (key is value).
    out_x = jax.block_until_ready(
        mha_f32(query, key_, key_, q_mask, k_mask, causal=None))
    ref_x = mha_reference(mha_f32, query, key_, key_, q_mask, k_mask, causal=None)
    np.testing.assert_allclose(np.asarray(out_x), np.asarray(ref_x),
                               rtol=2e-3, atol=2e-3)

    print("KERNEL_OK")
</pallas_src>

<mosaic_0001>
module attributes {stable_mosaic.version = 11 : i64} {
  func.func @_mproj_kernel(%arg0: i32, %arg1: i32, %arg2: i32, %arg3: i32, %arg4: memref<1x16x32xf32, #tpu.memory_space<vmem>>, %arg5: memref<1x32x32xbf16, #tpu.memory_space<vmem>>, %arg6: memref<1x1x32xf32, #tpu.memory_space<vmem>>, %arg7: memref<1x16x32xbf16, #tpu.memory_space<vmem>>, %arg8: memref<16x32xf32, #tpu.memory_space<vmem>>) attributes {dimension_semantics = [#tpu.dimension_semantics<parallel>, #tpu.dimension_semantics<parallel>, #tpu.dimension_semantics<parallel>, #tpu.dimension_semantics<arbitrary>], iteration_bounds = array<i64: 1, 1, 1, 1>, scalar_prefetch = 0 : i64, scratch_operands = 1 : i64, tpu.core_type = #tpu.core_type<tc>, window_params = [{transform_indices = @transform_0, window_bounds = array<i64: 1, 16, 32>}, {transform_indices = @transform_1, window_bounds = array<i64: 1, 32, 32>}, {transform_indices = @transform_2, window_bounds = array<i64: 1, 1, 32>}, {transform_indices = @transform_3, window_bounds = array<i64: 1, 16, 32>}]} {
    %c0_i32 = arith.constant 0 : i32
    %0 = arith.cmpi eq, %arg3, %c0_i32 : i32
    %1 = arith.extui %0 : i1 to i32
    %c0_i32_0 = arith.constant 0 : i32
    %2 = arith.cmpi ne, %1, %c0_i32_0 : i32
    scf.if %2 {
      %cst_12 = arith.constant 0.000000e+00 : f32
      %15 = vector.broadcast %cst_12 : f32 to vector<16x32xf32>
      %c0_13 = arith.constant 0 : index
      %c0_14 = arith.constant 0 : index
      %16 = vector.load %arg8[%c0_13, %c0_14] : memref<16x32xf32, #tpu.memory_space<vmem>>, vector<16x32xf32>
      tpu.vector_store %arg8[%c0_13, %c0_14], %15 {strides = array<i32>} : memref<16x32xf32, #tpu.memory_space<vmem>>, vector<16x32xf32>,
    } else {
    }
    %c0 = arith.constant 0 : index
    %c0_1 = arith.constant 0 : index
    %3 = vector.load %arg8[%c0, %c0_1] : memref<16x32xf32, #tpu.memory_space<vmem>>, vector<16x32xf32>
    %c0_2 = arith.constant 0 : index
    %c0_3 = arith.constant 0 : index
    %c0_4 = arith.constant 0 : index
    %4 = vector.load %arg4[%c0_2, %c0_3, %c0_4] : memref<1x16x32xf32, #tpu.memory_space<vmem>>, vector<1x16x32xf32>
    %5 = vector.shape_cast %4 : vector<1x16x32xf32> to vector<16x32xf32>
    %6 = arith.truncf %5 : vector<16x32xf32> to vector<16x32xbf16>
    %c0_5 = arith.constant 0 : index
    %c0_6 = arith.constant 0 : index
    %c0_7 = arith.constant 0 : index
    %7 = vector.load %arg5[%c0_5, %c0_6, %c0_7] : memref<1x32x32xbf16, #tpu.memory_space<vmem>>, vector<1x32x32xbf16>
    %8 = vector.shape_cast %7 : vector<1x32x32xbf16> to vector<32x32xbf16>
    %cst = arith.constant dense<0.000000e+00> : vector<16x32xf32>
    %9 = tpu.matmul %6, %8, %cst {dimension_numbers = #tpu.dot_dimension_numbers<[1], [0], [0], [1], [0, 0, 1, 1], [], []>} : vector<16x32xbf16>, vector<32x32xbf16>, vector<16x32xf32> -> vector<16x32xf32>
    %10 = arith.addf %3, %9 : vector<16x32xf32>
    %c0_8 = arith.constant 0 : index
    %c0_9 = arith.constant 0 : index
    %11 = vector.load %arg8[%c0_8, %c0_9] : memref<16x32xf32, #tpu.memory_space<vmem>>, vector<16x32xf32>
    tpu.vector_store %arg8[%c0_8, %c0_9], %10 {strides = array<i32>} : memref<16x32xf32, #tpu.memory_space<vmem>>, vector<16x32xf32>,
    %c0_i32_10 = arith.constant 0 : i32
    %12 = arith.cmpi eq, %arg3, %c0_i32_10 : i32
    %13 = arith.extui %12 : i1 to i32
    %c0_i32_11 = arith.constant 0 : i32
    %14 = arith.cmpi ne, %13, %c0_i32_11 : i32
    scf.if %14 {
      %c0_12 = arith.constant 0 : index
      %c0_13 = arith.constant 0 : index
      %15 = vector.load %arg8[%c0_12, %c0_13] : memref<16x32xf32, #tpu.memory_space<vmem>>, vector<16x32xf32>
      %c0_14 = arith.constant 0 : index
      %c0_15 = arith.constant 0 : index
      %c0_16 = arith.constant 0 : index
      %16 = vector.load %arg6[%c0_14, %c0_15, %c0_16] : memref<1x1x32xf32, #tpu.memory_space<vmem>>, vector<1x1x32xf32>
      %17 = vector.shape_cast %16 : vector<1x1x32xf32> to vector<1x32xf32>
      %18 = vector.broadcast %17 : vector<1x32xf32> to vector<16x32xf32>
      %19 = arith.addf %15, %18 : vector<16x32xf32>
      %cst_17 = arith.constant 0.000000e+00 : f32
      %20 = vector.broadcast %cst_17 : f32 to vector<16x32xf32>
      %21 = arith.cmpf oge, %19, %20 : vector<16x32xf32>
      %cst_18 = arith.constant 2.000000e-01 : f32
      %22 = vector.broadcast %cst_18 : f32 to vector<16x32xf32>
      %23 = arith.mulf %22, %19 : vector<16x32xf32>
      %24 = arith.select %21, %19, %23 : vector<16x32xi1>, vector<16x32xf32>
      %25 = arith.truncf %24 : vector<16x32xf32> to vector<16x32xbf16>
      %c0_19 = arith.constant 0 : index
      %c0_20 = arith.constant 0 : index
      %c0_21 = arith.constant 0 : index
      %26 = vector.load %arg7[%c0_19, %c0_20, %c0_21] : memref<1x16x32xbf16, #tpu.memory_space<vmem>>, vector<1x16x32xbf16>
      %27 = vector.shape_cast %26 : vector<1x16x32xbf16> to vector<16x32xbf16>
      %28 = vector.shape_cast %25 : vector<16x32xbf16> to vector<1x16x32xbf16>
      tpu.vector_store %arg7[%c0_19, %c0_20, %c0_21], %28 {strides = array<i32>} : memref<1x16x32xbf16, #tpu.memory_space<vmem>>, vector<1x16x32xbf16>,
    } else {
    }
    return
  }
  func.func @transform_0(%arg0: i32, %arg1: i32, %arg2: i32, %arg3: i32) -> (i32, i32, i32) {
    %c0_i32 = arith.constant 0 : i32
    return %arg0, %arg1, %arg3 : i32, i32, i32
  }
  func.func @transform_1(%arg0: i32, %arg1: i32, %arg2: i32, %arg3: i32) -> (i32, i32, i32) {
    %c0_i32 = arith.constant 0 : i32
    return %arg0, %arg3, %arg2 : i32, i32, i32
  }
  func.func @transform_2(%arg0: i32, %arg1: i32, %arg2: i32, %arg3: i32) -> (i32, i32, i32) {
    %c0_i32 = arith.constant 0 : i32
    %c0_i32_0 = arith.constant 0 : i32
    return %arg0, %c0_i32, %arg2 : i32, i32, i32
  }
  func.func @transform_3(%arg0: i32, %arg1: i32, %arg2: i32, %arg3: i32) -> (i32, i32, i32) {
    %c0_i32 = arith.constant 0 : i32
    return %arg0, %arg1, %arg2 : i32, i32, i32
  }
}

</mosaic_0001>

<llo_original>
// kernel: tpu_custom_call.1
$region0: #{tpu_custom_call.1}
  #allocation0 [shape = 'u32[]', space=smem, size = 0x4, offset = 0x4, fixed_abs, tag = 'smem constant byte address 0x4 - core index']
  #allocation1 [shape = 'u32[144,128]{1,0:T(1,128)}', space=vmem, size = 0x12000, scoped, tag = 'internal scratch']
  #allocation2 [shape = 'f32[16,32]{1,0:T(8,128)}', space=vmem, size = 0x2000, scoped, tag = 'scratch operand']
  %s0 = inlined_call_operand.hbm [shape: f32[1,16,32], index: 0, kind: input, shape index: {}]
  %s1 = inlined_call_operand.hbm [shape: bf16[1,32,32], index: 1, kind: input, shape index: {}]
  %s2 = inlined_call_operand.vmem [shape: f32[1,1,32], index: 2, kind: input, shape index: {}]
  %s3 = inlined_call_operand.hbm [shape: bf16[1,16,32], index: 3, kind: output, shape index: {}]
  %s4 = sld [smem:[#allocation0]]
  $region38: #{tpu_custom_call.1} parent=0
    _
  %s6 = ssub.s32 1, %s4
  %s7 = scalar_select 0, %s6, %s4
  $region1: #{tpu_custom_call.1} parent=0
    #allocation3 [shape = 'u8[8192]{0}', space=vmem, size = 0x2000, scoped, tag = 'input window, operand 0, single buffered']
    #allocation4 [shape = 's32[1]{0}', space=sflag, size = 0x4, scoped, tag = 'scoped memory for tpu_custom_call.1']
    #allocation5 [shape = 's32[1]{0}', space=sflag, size = 0x4, scoped, tag = 'scoped memory for tpu_custom_call.1']
    #allocation6 [shape = 'u8[8192]{0}', space=vmem, size = 0x2000, scoped, tag = 'input window, operand 1, single buffered']
    #allocation7 [shape = 's32[1]{0}', space=sflag, size = 0x4, scoped, tag = 'scoped memory for tpu_custom_call.1']
    #allocation8 [shape = 'u8[4096]{0}', space=vmem, size = 0x1000, scoped, tag = 'output window, operand 0, single buffered']
    %8 = vsyncpa [#allocation4], 0
    %9 = vsyncpa [#allocation7], 0
    %10 = vsyncpa [#allocation5], 0
    // Predicated region
    $region2: #{tpu_custom_call.1} parent=1 // pred_check
      _
    $region3: #{tpu_custom_call.1} parent=1 // pred_check_branch
      %12 = sbr.rel (0) target = $region5
    $region4: #{tpu_custom_call.1} parent=1 // pred_region
      %s14 = ssub.s32 256, 256
      %15 = vsyncadd [#allocation4], %s14
      %s16 = sshll.u32 [#allocation3], 4
      %s17 = int_to_ptr.vmem [resolvable:$true] %s16
      %22 = dma.hbm_to_vmem [thread:$0]  %s0, 256, %s17, [#allocation4], 128, 128, 8
    $region5: #{tpu_custom_call.1} parent=1 // pred_fallthru
      _
    // Predicated region
    $region6: #{tpu_custom_call.1} parent=1 // pred_check
      _
    $region7: #{tpu_custom_call.1} parent=1 // pred_check_branch
      %24 = sbr.rel (0) target = $region9
    $region8: #{tpu_custom_call.1} parent=1 // pred_region
      %s26 = ssub.s32 256, 256
      %27 = vsyncadd [#allocation7], %s26
      %s28 = sshll.u32 [#allocation6], 4
      %s29 = int_to_ptr.vmem [resolvable:$true] %s28
      %34 = dma.hbm_to_vmem [thread:$0]  %s1, 256, %s29, [#allocation7], 64, 64, 4
    $region9: #{tpu_custom_call.1} parent=1 // pred_fallthru
      _
    // Predicated region
    $region10: #{tpu_custom_call.1} parent=1 // pred_check
      _
    $region11: #{tpu_custom_call.1} parent=1 // pred_check_branch
      %36 = sbr.rel (0) target = $region13
    $region12: #{tpu_custom_call.1} parent=1 // pred_region
      _
    $region13: #{tpu_custom_call.1} parent=1 // pred_fallthru
      _
    // Predicated region
    $region14: #{tpu_custom_call.1} parent=1 // pred_check
      _
    $region15: #{tpu_custom_call.1} parent=1 // pred_check_branch
      %38 = sbr.rel (0) target = $region17
    $region16: #{tpu_custom_call.1} parent=1 // pred_region
      %39 = dma.done [#allocation4], 256
    $region17: #{tpu_custom_call.1} parent=1 // pred_fallthru
      _
    // Predicated region
    $region18: #{tpu_custom_call.1} parent=1 // pred_check
      _
    $region19: #{tpu_custom_call.1} parent=1 // pred_check_branch
      %41 = sbr.rel (0) target = $region21
    $region20: #{tpu_custom_call.1} parent=1 // pred_region
      %42 = dma.done [#allocation7], 256
    $region21: #{tpu_custom_call.1} parent=1 // pred_fallthru
      _
    %p44 = scmp.eq.s32.totalorder 0, 0
    // Predicated region
    $region22: #{tpu_custom_call.1} parent=1 // pred_check
      %p45 = pneg %p44
    $region23: #{tpu_custom_call.1} parent=1 // pred_check_branch
      %47 = sbr.rel (%p45) target = $region25
    $region24: #{tpu_custom_call.1} parent=1 // pred_region
      %vm48 = vcmask 261120
      %49 = vst.msk [vmem:[#allocation2] sm:$0xff] %vm48, 0.0
      %50 = vst.msk [vmem:[#allocation2 + $0x8] sm:$0xff] %vm48, 0.0
    $region25: #{tpu_custom_call.1} parent=1 // pred_fallthru
      _
    %v51 = vld [vmem:[#allocation2] sm:$0xff]
    %v52 = vld [vmem:[#allocation2 + $0x8] sm:$0xff]
    %v53 = vld [vmem:[#allocation3] sm:$0xff]
    %v54 = vld [vmem:[#allocation3 + $0x8] sm:$0xff]
    %v55 = vpack.c.bf16 %v54, %v53
    %v56 = vld [vmem:[#allocation6] sm:$0xf]
    %v57 = vld [vmem:[#allocation6 + $0x4] sm:$0xf]
    %v58 = vld [vmem:[#allocation6 + $0x8] sm:$0xf]
    %v59 = vld [vmem:[#allocation6 + $0xc] sm:$0xf]
    %v64 = vunpack.c.l.b16 %v56
    %v65 = vunpack.c.l.b16 %v57
    %v66 = vunpack.c.l.b16 %v58
    %v67 = vunpack.c.l.b16 %v59
    %v68 = vpack.c.b16 %v65, %v64
    %v69 = vpack.c.b16 %v67, %v66
    %vm72 = vcmask 261120
    %v74 = vsel %vm72, %v55, 0
    %76 = vmatprep.subr.bf16.mxu0 0
    %77 = vmatpush1.bf16.msra.mxu0 0
    %78 = vmatprep.subr.bf16.mxu0 0
    %79 = vmatpush1.bf16.msra.mxu0 0
    %80 = vmatprep.subr.bf16.mxu0 0
    %81 = vmatpush1.bf16.msra.mxu0 0
    %82 = vmatprep.subr.bf16.mxu0 0
    %83 = vmatpush1.bf16.msra.mxu0 0
    %84 = vmatprep.subr.bf16.mxu0 0
    %85 = vmatpush1.bf16.msra.mxu0 0
    %86 = vmatprep.subr.bf16.mxu0 0
    %87 = vmatpush1.bf16.msra.mxu0 0
    %88 = vmatprep.subr.bf16.mxu0 0
    %89 = vmatpush1.bf16.msra.mxu0 %v69
    %90 = vmatprep.subr.bf16.mxu0 0
    %91 = vmatpush1.bf16.msra.mxu0 %v68
    %92 = vmatprep.subr.bf16.mxu0 0
    %93 = vmatpush2.bf16.msra.mxu0 0
    %94 = vmatprep.subr.bf16.mxu0 0
    %95 = vmatpush2.bf16.msra.mxu0 0
    %96 = vmatprep.subr.bf16.mxu0 0
    %97 = vmatpush2.bf16.msra.mxu0 0
    %98 = vmatprep.subr.bf16.mxu0 0
    %99 = vmatpush2.bf16.msra.mxu0 0
    %100 = vmatprep.subr.bf16.mxu0 0
    %101 = vmatpush2.bf16.msra.mxu0 0
    %102 = vmatprep.subr.bf16.mxu0 0
    %103 = vmatpush2.bf16.msra.mxu0 0
    %104 = vmatprep.subr.bf16.mxu0 0
    %105 = vmatpush2.bf16.msra.mxu0 0
    %106 = vmatprep.subr.bf16.mxu0 0
    %107 = vmatpush2.bf16.msra.mxu0 0
    %108 = vmatprep.mubr.bf16.mxu0 0
    %109 = vmatmul.mubr.bf16.gmra.mxu0 %v74
    %v110 = vpop.f32.mrf.mxu0
    %v111 = vadd.f32 0.0, %v110
    %v112 = vpop.f32.mrf.mxu0
    %v113 = vpop.f32.mrf.mxu0
    %v114 = vadd.f32 0.0, %v113
    %v115 = vpop.f32.mrf.mxu0
    %116 = vdwg.mxu0
    %v117 = vadd.f32 %v51, %v111
    %v118 = vadd.f32 %v52, %v114
    %119 = vst.msk [vmem:[#allocation2] sm:$0xff] %vm72, %v117
    %120 = vst.msk [vmem:[#allocation2 + $0x8] sm:$0xff] %vm72, %v118
    // Predicated region
    $region26: #{tpu_custom_call.1} parent=1 // pred_check
      %p121 = pneg %p44
    $region27: #{tpu_custom_call.1} parent=1 // pred_check_branch
      %123 = sbr.rel (%p121) target = $region29
    $region28: #{tpu_custom_call.1} parent=1 // pred_region
      %v124 = vld [vmem:[#allocation2] sm:$0xff]
      %v125 = vld [vmem:[#allocation2 + $0x8] sm:$0xff]
      %v126 = vld [vmem:[%s2] sm:$0x1]
      %v128 = vlaneseq
      %v129 = vshrl.u32 %v128, 7
      %v130 = vsub.s32 0, %v129
      %v131 = vrot.slane %v126, %v130
      %v133 = vadd.f32 %v124, %v131
      %v134 = vadd.f32 %v125, %v131
      %vm135 = vcmp.ge.f32.partialorder %v133, 0.0
      %vm136 = vcmp.ge.f32.partialorder %v134, 0.0
      %v137 = vmul.f32 %v133, 0.2
      %v138 = vmul.f32 %v134, 0.2
      %v139 = vsel %vm135, %v133, %v137
      %v140 = vsel %vm136, %v134, %v138
      %v141 = vpack.c.bf16 %v140, %v139
      %v143 = vunpack.c.l.b16 %v141
      %v144 = vunpack.c.h.b16 %v141
      %v145 = vpack.c.b16 %v143, %v143
      %v146 = vpack.c.b16 %v144, %v144
      %vm149 = vcmask 257024
      %150 = vst.msk [vmem:[#allocation8] sm:$0xf] %vm149, %v145
      %151 = vst.msk [vmem:[#allocation8 + $0x4] sm:$0xf] %vm149, %v146
    $region29: #{tpu_custom_call.1} parent=1 // pred_fallthru
      _
    // Predicated region
    $region30: #{tpu_custom_call.1} parent=1 // pred_check
      _
    $region31: #{tpu_custom_call.1} parent=1 // pred_check_branch
      %153 = sbr.rel (0) target = $region33
    $region32: #{tpu_custom_call.1} parent=1 // pred_region
      %s155 = ssub.s32 128, 128
      %156 = vsyncadd [#allocation5], %s155
      %s157 = sshll.u32 [#allocation8], 4
      %s158 = int_to_ptr.vmem [resolvable:$true] %s157
      %163 = dma.vmem_to_hbm [thread:$0]  %s158, 128, %s3, [#allocation5], 64, 64, 4
    $region33: #{tpu_custom_call.1} parent=1 // pred_fallthru
      _
    // Predicated region
    $region34: #{tpu_custom_call.1} parent=1 // pred_check
      _
    $region35: #{tpu_custom_call.1} parent=1 // pred_check_branch
      %165 = sbr.rel (0) target = $region37
    $region36: #{tpu_custom_call.1} parent=1 // pred_region
      %166 = dma.done [#allocation5], 128
    $region37: #{tpu_custom_call.1} parent=1 // pred_fallthru
      _
    %167 = vsyncpa [#allocation4], 1
    %168 = vsyncpa [#allocation7], 1
    %169 = vsyncpa [#allocation5], 1

</llo_original>
